<compile_context>
chip_gen: v6e
topology: v6e:2x2x1
jax: 0.10.0
libtpu: 0.0.40
codegen_flags: <defaults>
</compile_context>

<pallas_src>
import jax
import jax.numpy as jnp
from jax.experimental import pallas as pl
from jax.experimental.pallas import tpu as pltpu


def ca_net_kernel(x_ref, w_ref, b_ref, eps_ref, out_ref):
    """x: (bm, T); w: (4, T, C); b: (4, 1, C); eps: (bm, C); out: (3, bm, C).

    Weight/bias block order along the leading axis:
      0: value half -> mu, 1: value half -> logvar,
      2: gate  half -> mu, 3: gate  half -> logvar.
    """
    x = x_ref[...]          # (bm, T)
    eps = eps_ref[...]      # (bm, C)

    def lin(i):
        # Full-width, lane-aligned (T, C) matmul on the MXU, f32 accumulate.
        return jnp.dot(x, w_ref[i], preferred_element_type=jnp.float32) + b_ref[i]

    # GLU, already split into lane-aligned column blocks (no in-kernel slices).
    mu = lin(0) * jax.nn.sigmoid(lin(2))          # (bm, C)
    logvar = lin(1) * jax.nn.sigmoid(lin(3))      # (bm, C)

    # Reparametrization (kept in f32).
    c_code = eps * jnp.exp(0.5 * logvar) + mu     # (bm, C)

    # Single packed output slab: one DMA, full-tile stores.
    out_ref[0, :, :] = c_code.astype(out_ref.dtype)
    out_ref[1, :, :] = mu.astype(out_ref.dtype)
    out_ref[2, :, :] = logvar.astype(out_ref.dtype)


def ca_net_forward(text_embedding, weight_t, bias, eps, *, block_b=256):
    """CA_NET forward.

    text_embedding: (B, T)   weight_t: (T, 4C) (nn.Linear weight, pre-transposed)
    bias:           (4C,)    eps:      (B, C)  (standard-normal noise)
    Returns (c_code, mu, logvar), each (B, C) float32.
    """
    B, T = text_embedding.shape
    four_c = weight_t.shape[1]
    C = four_c // 4

    # Host-side one-time reshuffle of the Linear parameters into four
    # lane-aligned (T, C) column blocks: [W_mu, W_lv, W_gmu, W_glv].
    w4 = weight_t.reshape(T, 4, C).transpose(1, 0, 2)   # (4, T, C)
    b4 = bias.reshape(4, 1, C)                           # (4, 1, C)

    out_shape = jax.ShapeDtypeStruct((3, B, C), jnp.float32)

    block_b = max(8, (block_b // 8) * 8)                 # sublane multiple
    num_blocks = pl.cdiv(B, block_b)

    if num_blocks <= 1:
        # Tiny batch: single invocation, everything resident in VMEM,
        # no grid / index-map plumbing.
        out = pl.pallas_call(
            ca_net_kernel,
            out_shape=out_shape,
            in_specs=[
                pl.BlockSpec(memory_space=pltpu.MemorySpace.VMEM),  # x
                pl.BlockSpec(memory_space=pltpu.MemorySpace.VMEM),  # w4
                pl.BlockSpec(memory_space=pltpu.MemorySpace.VMEM),  # b4
                pl.BlockSpec(memory_space=pltpu.MemorySpace.VMEM),  # eps
            ],
            out_specs=pl.BlockSpec(memory_space=pltpu.MemorySpace.VMEM),
        )(text_embedding, w4, b4, eps)
    else:
        # Realistic batch: tile the batch dim over a parallel grid axis
        # (double-buffered activation DMAs; 2-TC sharding on v7x).
        # Weights/bias use constant index maps so they stay resident in VMEM.
        out = pl.pallas_call(
            ca_net_kernel,
            out_shape=out_shape,
            grid=(num_blocks,),
            in_specs=[
                pl.BlockSpec((block_b, T), lambda i: (i, 0)),
                pl.BlockSpec((4, T, C), lambda i: (0, 0, 0)),
                pl.BlockSpec((4, 1, C), lambda i: (0, 0, 0)),
                pl.BlockSpec((block_b, C), lambda i: (i, 0)),
            ],
            out_specs=pl.BlockSpec((3, block_b, C), lambda i: (0, i, 0)),
            compiler_params=pltpu.CompilerParams(
                dimension_semantics=("parallel",)),
        )(text_embedding, w4, b4, eps)

    return out[0], out[1], out[2]


def _reference(x, w, b, e):
    """Pure-JAX reference matching the PyTorch CA_NET forward."""
    y = x @ w + b
    two_c = w.shape[1] // 2
    g = y[:, :two_c] * jax.nn.sigmoid(y[:, two_c:])
    c = two_c // 2
    mu, lv = g[:, :c], g[:, c:]
    return e * jnp.exp(0.5 * lv) + mu, mu, lv


if __name__ == "__main__":
    # Small shapes consistent with the module:
    #   cfg.TEXT.EMBEDDING_DIM -> t_dim = 32
    #   cfg.GAN.CONDITION_DIM  -> c_dim = 16   (fc out = 4 * c_dim = 64)
    B, T_DIM, C_DIM = 8, 32, 16

    key = jax.random.PRNGKey(0)
    k_x, k_w, k_b, k_eps = jax.random.split(key, 4)

    # Deterministic synthetic parameters (not loaded from a checkpoint).
    text_embedding = jax.random.normal(k_x, (B, T_DIM), dtype=jnp.float32)
    weight_t = jax.random.normal(k_w, (T_DIM, 4 * C_DIM), dtype=jnp.float32) * 0.05
    bias = jax.random.normal(k_b, (4 * C_DIM,), dtype=jnp.float32) * 0.01
    # Reparametrization noise (eps ~ N(0,1) in the PyTorch module).
    eps = jax.random.normal(k_eps, (B, C_DIM), dtype=jnp.float32)

    # --- small-batch (gridless) path ---
    c_code, mu, logvar = ca_net_forward(text_embedding, weight_t, bias, eps)
    jax.block_until_ready((c_code, mu, logvar))

    c_r, mu_r, lv_r = _reference(text_embedding, weight_t, bias, eps)
    assert jnp.allclose(mu, mu_r, atol=1e-5)
    assert jnp.allclose(logvar, lv_r, atol=1e-5)
    assert jnp.allclose(c_code, c_r, atol=1e-5)

    # --- batch-tiled (grid) path, still small shapes ---
    B2 = 64
    k_x2, k_e2 = jax.random.split(jax.random.PRNGKey(1))
    x2 = jax.random.normal(k_x2, (B2, T_DIM), dtype=jnp.float32)
    e2 = jax.random.normal(k_e2, (B2, C_DIM), dtype=jnp.float32)
    c2, mu2, lv2 = ca_net_forward(x2, weight_t, bias, e2, block_b=8)
    jax.block_until_ready((c2, mu2, lv2))

    c2_r, mu2_r, lv2_r = _reference(x2, weight_t, bias, e2)
    assert jnp.allclose(mu2, mu2_r, atol=1e-5)
    assert jnp.allclose(lv2, lv2_r, atol=1e-5)
    assert jnp.allclose(c2, c2_r, atol=1e-5)

    print("KERNEL_OK")
</pallas_src>

<mosaic_0001>
module attributes {stable_mosaic.version = 11 : i64} {
  func.func @ca_net_kernel(%arg0: memref<8x32xf32, #tpu.memory_space<vmem>>, %arg1: memref<4x32x16xf32, #tpu.memory_space<vmem>>, %arg2: memref<4x1x16xf32, #tpu.memory_space<vmem>>, %arg3: memref<8x16xf32, #tpu.memory_space<vmem>>, %arg4: memref<3x8x16xf32, #tpu.memory_space<vmem>>) attributes {dimension_semantics = [], scalar_prefetch = 0 : i64, scratch_operands = 0 : i64, tpu.core_type = #tpu.core_type<tc>} {
    %c0 = arith.constant 0 : index
    %c0_0 = arith.constant 0 : index
    %0 = vector.load %arg0[%c0, %c0_0] : memref<8x32xf32, #tpu.memory_space<vmem>>, vector<8x32xf32>
    %c0_1 = arith.constant 0 : index
    %c0_2 = arith.constant 0 : index
    %1 = vector.load %arg3[%c0_1, %c0_2] : memref<8x16xf32, #tpu.memory_space<vmem>>, vector<8x16xf32>
    %c0_3 = arith.constant 0 : index
    %c0_4 = arith.constant 0 : index
    %c0_5 = arith.constant 0 : index
    %2 = vector.load %arg1[%c0_3, %c0_4, %c0_5] : memref<4x32x16xf32, #tpu.memory_space<vmem>>, vector<1x32x16xf32>
    %3 = vector.shape_cast %2 : vector<1x32x16xf32> to vector<32x16xf32>
    %cst = arith.constant dense<0.000000e+00> : vector<8x16xf32>
    %4 = tpu.matmul %0, %3, %cst {dimension_numbers = #tpu.dot_dimension_numbers<[1], [0], [0], [1], [0, 0, 1, 1], [], []>} : vector<8x32xf32>, vector<32x16xf32>, vector<8x16xf32> -> vector<8x16xf32>
    %c0_6 = arith.constant 0 : index
    %c0_7 = arith.constant 0 : index
    %c0_8 = arith.constant 0 : index
    %5 = vector.load %arg2[%c0_6, %c0_7, %c0_8] : memref<4x1x16xf32, #tpu.memory_space<vmem>>, vector<1x1x16xf32>
    %6 = vector.shape_cast %5 : vector<1x1x16xf32> to vector<1x16xf32>
    %7 = vector.broadcast %6 : vector<1x16xf32> to vector<8x16xf32>
    %8 = arith.addf %4, %7 : vector<8x16xf32>
    %c2 = arith.constant 2 : index
    %c0_9 = arith.constant 0 : index
    %c0_10 = arith.constant 0 : index
    %9 = vector.load %arg1[%c2, %c0_9, %c0_10] : memref<4x32x16xf32, #tpu.memory_space<vmem>>, vector<1x32x16xf32>
    %10 = vector.shape_cast %9 : vector<1x32x16xf32> to vector<32x16xf32>
    %cst_11 = arith.constant dense<0.000000e+00> : vector<8x16xf32>
    %11 = tpu.matmul %0, %10, %cst_11 {dimension_numbers = #tpu.dot_dimension_numbers<[1], [0], [0], [1], [0, 0, 1, 1], [], []>} : vector<8x32xf32>, vector<32x16xf32>, vector<8x16xf32> -> vector<8x16xf32>
    %c2_12 = arith.constant 2 : index
    %c0_13 = arith.constant 0 : index
    %c0_14 = arith.constant 0 : index
    %12 = vector.load %arg2[%c2_12, %c0_13, %c0_14] : memref<4x1x16xf32, #tpu.memory_space<vmem>>, vector<1x1x16xf32>
    %13 = vector.shape_cast %12 : vector<1x1x16xf32> to vector<1x16xf32>
    %14 = vector.broadcast %13 : vector<1x16xf32> to vector<8x16xf32>
    %15 = arith.addf %11, %14 : vector<8x16xf32>
    %16 = arith.negf %15 : vector<8x16xf32>
    %17 = math.exp %16 : vector<8x16xf32>
    %cst_15 = arith.constant 1.000000e+00 : f32
    %18 = vector.broadcast %cst_15 : f32 to vector<8x16xf32>
    %19 = arith.addf %18, %17 : vector<8x16xf32>
    %20 = arith.divf %18, %19 : vector<8x16xf32>
    %21 = arith.mulf %8, %20 : vector<8x16xf32>
    %c1 = arith.constant 1 : index
    %c0_16 = arith.constant 0 : index
    %c0_17 = arith.constant 0 : index
    %22 = vector.load %arg1[%c1, %c0_16, %c0_17] : memref<4x32x16xf32, #tpu.memory_space<vmem>>, vector<1x32x16xf32>
    %23 = vector.shape_cast %22 : vector<1x32x16xf32> to vector<32x16xf32>
    %cst_18 = arith.constant dense<0.000000e+00> : vector<8x16xf32>
    %24 = tpu.matmul %0, %23, %cst_18 {dimension_numbers = #tpu.dot_dimension_numbers<[1], [0], [0], [1], [0, 0, 1, 1], [], []>} : vector<8x32xf32>, vector<32x16xf32>, vector<8x16xf32> -> vector<8x16xf32>
    %c1_19 = arith.constant 1 : index
    %c0_20 = arith.constant 0 : index
    %c0_21 = arith.constant 0 : index
    %25 = vector.load %arg2[%c1_19, %c0_20, %c0_21] : memref<4x1x16xf32, #tpu.memory_space<vmem>>, vector<1x1x16xf32>
    %26 = vector.shape_cast %25 : vector<1x1x16xf32> to vector<1x16xf32>
    %27 = vector.broadcast %26 : vector<1x16xf32> to vector<8x16xf32>
    %28 = arith.addf %24, %27 : vector<8x16xf32>
    %c3 = arith.constant 3 : index
    %c0_22 = arith.constant 0 : index
    %c0_23 = arith.constant 0 : index
    %29 = vector.load %arg1[%c3, %c0_22, %c0_23] : memref<4x32x16xf32, #tpu.memory_space<vmem>>, vector<1x32x16xf32>
    %30 = vector.shape_cast %29 : vector<1x32x16xf32> to vector<32x16xf32>
    %cst_24 = arith.constant dense<0.000000e+00> : vector<8x16xf32>
    %31 = tpu.matmul %0, %30, %cst_24 {dimension_numbers = #tpu.dot_dimension_numbers<[1], [0], [0], [1], [0, 0, 1, 1], [], []>} : vector<8x32xf32>, vector<32x16xf32>, vector<8x16xf32> -> vector<8x16xf32>
    %c3_25 = arith.constant 3 : index
    %c0_26 = arith.constant 0 : index
    %c0_27 = arith.constant 0 : index
    %32 = vector.load %arg2[%c3_25, %c0_26, %c0_27] : memref<4x1x16xf32, #tpu.memory_space<vmem>>, vector<1x1x16xf32>
    %33 = vector.shape_cast %32 : vector<1x1x16xf32> to vector<1x16xf32>
    %34 = vector.broadcast %33 : vector<1x16xf32> to vector<8x16xf32>
    %35 = arith.addf %31, %34 : vector<8x16xf32>
    %36 = arith.negf %35 : vector<8x16xf32>
    %37 = math.exp %36 : vector<8x16xf32>
    %cst_28 = arith.constant 1.000000e+00 : f32
    %38 = vector.broadcast %cst_28 : f32 to vector<8x16xf32>
    %39 = arith.addf %38, %37 : vector<8x16xf32>
    %40 = arith.divf %38, %39 : vector<8x16xf32>
    %41 = arith.mulf %28, %40 : vector<8x16xf32>
    %cst_29 = arith.constant 5.000000e-01 : f32
    %42 = vector.broadcast %cst_29 : f32 to vector<8x16xf32>
    %43 = arith.mulf %42, %41 : vector<8x16xf32>
    %44 = math.exp %43 : vector<8x16xf32>
    %45 = arith.mulf %1, %44 : vector<8x16xf32>
    %46 = arith.addf %45, %21 : vector<8x16xf32>
    %c0_30 = arith.constant 0 : index
    %c0_31 = arith.constant 0 : index
    %c0_32 = arith.constant 0 : index
    %47 = vector.load %arg4[%c0_30, %c0_31, %c0_32] : memref<3x8x16xf32, #tpu.memory_space<vmem>>, vector<1x8x16xf32>
    %48 = vector.shape_cast %47 : vector<1x8x16xf32> to vector<8x16xf32>
    %49 = vector.shape_cast %46 : vector<8x16xf32> to vector<1x8x16xf32>
    tpu.vector_store %arg4[%c0_30, %c0_31, %c0_32], %49 {strides = array<i32>} : memref<3x8x16xf32, #tpu.memory_space<vmem>>, vector<1x8x16xf32>,
    %c1_33 = arith.constant 1 : index
    %c0_34 = arith.constant 0 : index
    %c0_35 = arith.constant 0 : index
    %50 = vector.load %arg4[%c1_33, %c0_34, %c0_35] : memref<3x8x16xf32, #tpu.memory_space<vmem>>, vector<1x8x16xf32>
    %51 = vector.shape_cast %50 : vector<1x8x16xf32> to vector<8x16xf32>
    %52 = vector.shape_cast %21 : vector<8x16xf32> to vector<1x8x16xf32>
    tpu.vector_store %arg4[%c1_33, %c0_34, %c0_35], %52 {strides = array<i32>} : memref<3x8x16xf32, #tpu.memory_space<vmem>>, vector<1x8x16xf32>,
    %c2_36 = arith.constant 2 : index
    %c0_37 = arith.constant 0 : index
    %c0_38 = arith.constant 0 : index
    %53 = vector.load %arg4[%c2_36, %c0_37, %c0_38] : memref<3x8x16xf32, #tpu.memory_space<vmem>>, vector<1x8x16xf32>
    %54 = vector.shape_cast %53 : vector<1x8x16xf32> to vector<8x16xf32>
    %55 = vector.shape_cast %41 : vector<8x16xf32> to vector<1x8x16xf32>
    tpu.vector_store %arg4[%c2_36, %c0_37, %c0_38], %55 {strides = array<i32>} : memref<3x8x16xf32, #tpu.memory_space<vmem>>, vector<1x8x16xf32>,
    return
  }
}

</mosaic_0001>

<llo_original>
// kernel: tpu_custom_call.1
$region0: #{tpu_custom_call.1}
  #allocation0 [shape = 'u32[]', space=smem, size = 0x4, offset = 0x4, fixed_abs, tag = 'smem constant byte address 0x4 - core index']
  #allocation1 [shape = 'u32[144,128]{1,0:T(1,128)}', space=vmem, size = 0x12000, scoped, tag = 'internal scratch']
  %s0 = inlined_call_operand.vmem [shape: f32[8,32], index: 0, kind: input, shape index: {}]
  %s1 = inlined_call_operand.vmem [shape: f32[4,32,16], index: 1, kind: input, shape index: {}]
  %s2 = inlined_call_operand.vmem [shape: f32[4,1,16], index: 2, kind: input, shape index: {}]
  %s3 = inlined_call_operand.vmem [shape: f32[8,16], index: 3, kind: input, shape index: {}]
  %s4 = inlined_call_operand.hbm [shape: f32[3,8,16], index: 4, kind: output, shape index: {}]
  %s5 = sld [smem:[#allocation0]]
  $region26: #{tpu_custom_call.1} parent=0
    _
  %s7 = ssub.s32 1, %s5
  %s8 = scalar_select 0, %s7, %s5
  $region1: #{tpu_custom_call.1} parent=0
    #allocation2 [shape = 'u8[12288]{0}', space=vmem, size = 0x3000, scoped, tag = 'output window, operand 0, single buffered']
    #allocation3 [shape = 's32[1]{0}', space=sflag, size = 0x4, scoped, tag = 'scoped memory for tpu_custom_call.1']
    %9 = vsyncpa [#allocation3], 0
    // Predicated region
    $region2: #{tpu_custom_call.1} parent=1 // pred_check
      _
    $region3: #{tpu_custom_call.1} parent=1 // pred_check_branch
      %11 = sbr.rel (0) target = $region5
    $region4: #{tpu_custom_call.1} parent=1 // pred_region
      _
    $region5: #{tpu_custom_call.1} parent=1 // pred_fallthru
      _
    // Predicated region
    $region6: #{tpu_custom_call.1} parent=1 // pred_check
      _
    $region7: #{tpu_custom_call.1} parent=1 // pred_check_branch
      %13 = sbr.rel (0) target = $region9
    $region8: #{tpu_custom_call.1} parent=1 // pred_region
      _
    $region9: #{tpu_custom_call.1} parent=1 // pred_fallthru
      _
    // Predicated region
    $region10: #{tpu_custom_call.1} parent=1 // pred_check
      _
    $region11: #{tpu_custom_call.1} parent=1 // pred_check_branch
      %15 = sbr.rel (0) target = $region13
    $region12: #{tpu_custom_call.1} parent=1 // pred_region
      _
    $region13: #{tpu_custom_call.1} parent=1 // pred_fallthru
      _
    // Predicated region
    $region14: #{tpu_custom_call.1} parent=1 // pred_check
      _
    $region15: #{tpu_custom_call.1} parent=1 // pred_check_branch
      %17 = sbr.rel (0) target = $region17
    $region16: #{tpu_custom_call.1} parent=1 // pred_region
      _
    $region17: #{tpu_custom_call.1} parent=1 // pred_fallthru
      _
    %v18 = vld [vmem:[%s0] sm:$0xff]
    %v19 = vld [vmem:[%s3] sm:$0xff]
    %v20 = vld [vmem:[%s1] sm:$0xff]
    %v21 = vld [vmem:[%s1 + $0x8] sm:$0xff]
    %v22 = vld [vmem:[%s1 + $0x10] sm:$0xff]
    %v23 = vld [vmem:[%s1 + $0x18] sm:$0xff]
    %v24 = vld [vmem:[%s2] sm:$0x1]
    %v26 = vlaneseq
    %v27 = vshrl.u32 %v26, 7
    %v28 = vsub.s32 0, %v27
    %v29 = vrot.slane %v24, %v28
    %vm31 = vcmask 261120
    %v33 = vsel %vm31, %v18, 0
    %35 = vmatprep.subr.mxu0 0.0
    %36 = vmatpush1.msra.mxu0 0.0
    %37 = vmatprep.subr.mxu0 0.0
    %38 = vmatpush1.msra.mxu0 0.0
    %39 = vmatprep.subr.mxu0 0.0
    %40 = vmatpush1.msra.mxu0 0.0
    %41 = vmatprep.subr.mxu0 0.0
    %42 = vmatpush1.msra.mxu0 0.0
    %43 = vmatprep.subr.mxu0 0.0
    %44 = vmatpush1.msra.mxu0 0.0
    %45 = vmatprep.subr.mxu0 0.0
    %46 = vmatpush1.msra.mxu0 0.0
    %47 = vmatprep.subr.mxu0 0.0
    %48 = vmatpush1.msra.mxu0 0.0
    %49 = vmatprep.subr.mxu0 0.0
    %50 = vmatpush1.msra.mxu0 0.0
    %51 = vmatprep.subr.mxu0 0.0
    %52 = vmatpush1.msra.mxu0 0.0
    %53 = vmatprep.subr.mxu0 0.0
    %54 = vmatpush1.msra.mxu0 0.0
    %55 = vmatprep.subr.mxu0 0.0
    %56 = vmatpush1.msra.mxu0 0.0
    %57 = vmatprep.subr.mxu0 0.0
    %58 = vmatpush1.msra.mxu0 0.0
    %59 = vmatprep.subr.mxu0 0.0
    %60 = vmatpush1.msra.mxu0 %v23
    %61 = vmatprep.subr.mxu0 0.0
    %62 = vmatpush1.msra.mxu0 %v22
    %63 = vmatprep.subr.mxu0 0.0
    %64 = vmatpush1.msra.mxu0 %v21
    %65 = vmatprep.subr.mxu0 0.0
    %66 = vmatpush1.msra.mxu0 %v20
    %67 = vmatprep.subr.mxu0 0.0
    %68 = vmatpush2.msra.mxu0 0.0
    %69 = vmatprep.subr.mxu0 0.0
    %70 = vmatpush2.msra.mxu0 0.0
    %71 = vmatprep.subr.mxu0 0.0
    %72 = vmatpush2.msra.mxu0 0.0
    %73 = vmatprep.subr.mxu0 0.0
    %74 = vmatpush2.msra.mxu0 0.0
    %75 = vmatprep.subr.mxu0 0.0
    %76 = vmatpush2.msra.mxu0 0.0
    %77 = vmatprep.subr.mxu0 0.0
    %78 = vmatpush2.msra.mxu0 0.0
    %79 = vmatprep.subr.mxu0 0.0
    %80 = vmatpush2.msra.mxu0 0.0
    %81 = vmatprep.subr.mxu0 0.0
    %82 = vmatpush2.msra.mxu0 0.0
    %83 = vmatprep.subr.mxu0 0.0
    %84 = vmatpush2.msra.mxu0 0.0
    %85 = vmatprep.subr.mxu0 0.0
    %86 = vmatpush2.msra.mxu0 0.0
    %87 = vmatprep.subr.mxu0 0.0
    %88 = vmatpush2.msra.mxu0 0.0
    %89 = vmatprep.subr.mxu0 0.0
    %90 = vmatpush2.msra.mxu0 0.0
    %91 = vmatprep.subr.mxu0 0.0
    %92 = vmatpush2.msra.mxu0 0.0
    %93 = vmatprep.subr.mxu0 0.0
    %94 = vmatpush2.msra.mxu0 0.0
    %95 = vmatprep.subr.mxu0 0.0
    %96 = vmatpush2.msra.mxu0 0.0
    %97 = vmatprep.subr.mxu0 0.0
    %98 = vmatpush2.msra.mxu0 0.0
    %99 = vmatprep.mubr.f32.mxu0 0.0
    %100 = vmatmul.mubr.f32.gmra.mxu0 %v33
    %v101 = vpop.f32.mrf.mxu0
    %v102 = vadd.f32 %v29, %v101
    %v103 = vpop.f32.mrf.mxu0
    %104 = vdwg.mxu0
    %s105 = scalar_lea.vmem %s1, 64
    %v106 = vld [vmem:[%s105] sm:$0xff]
    %v107 = vld [vmem:[%s105 + $0x8] sm:$0xff]
    %v108 = vld [vmem:[%s105 + $0x10] sm:$0xff]
    %v109 = vld [vmem:[%s105 + $0x18] sm:$0xff]
    %s110 = scalar_lea.vmem %s2, 2
    %v111 = vld [vmem:[%s110] sm:$0x1]
    %v113 = vlaneseq
    %v114 = vshrl.u32 %v113, 7
    %v115 = vsub.s32 0, %v114
    %v116 = vrot.slane %v111, %v115
    %118 = vmatprep.subr.mxu0 0.0
    %119 = vmatpush1.msra.mxu0 0.0
    %120 = vmatprep.subr.mxu0 0.0
    %121 = vmatpush1.msra.mxu0 0.0
    %122 = vmatprep.subr.mxu0 0.0
    %123 = vmatpush1.msra.mxu0 0.0
    %124 = vmatprep.subr.mxu0 0.0
    %125 = vmatpush1.msra.mxu0 0.0
    %126 = vmatprep.subr.mxu0 0.0
    %127 = vmatpush1.msra.mxu0 0.0
    %128 = vmatprep.subr.mxu0 0.0
    %129 = vmatpush1.msra.mxu0 0.0
    %130 = vmatprep.subr.mxu0 0.0
    %131 = vmatpush1.msra.mxu0 0.0
    %132 = vmatprep.subr.mxu0 0.0
    %133 = vmatpush1.msra.mxu0 0.0
    %134 = vmatprep.subr.mxu0 0.0
    %135 = vmatpush1.msra.mxu0 0.0
    %136 = vmatprep.subr.mxu0 0.0
    %137 = vmatpush1.msra.mxu0 0.0
    %138 = vmatprep.subr.mxu0 0.0
    %139 = vmatpush1.msra.mxu0 0.0
    %140 = vmatprep.subr.mxu0 0.0
    %141 = vmatpush1.msra.mxu0 0.0
    %142 = vmatprep.subr.mxu0 0.0
    %143 = vmatpush1.msra.mxu0 %v109
    %144 = vmatprep.subr.mxu0 0.0
    %145 = vmatpush1.msra.mxu0 %v108
    %146 = vmatprep.subr.mxu0 0.0
    %147 = vmatpush1.msra.mxu0 %v107
    %148 = vmatprep.subr.mxu0 0.0
    %149 = vmatpush1.msra.mxu0 %v106
    %150 = vmatprep.subr.mxu0 0.0
    %151 = vmatpush2.msra.mxu0 0.0
    %152 = vmatprep.subr.mxu0 0.0
    %153 = vmatpush2.msra.mxu0 0.0
    %154 = vmatprep.subr.mxu0 0.0
    %155 = vmatpush2.msra.mxu0 0.0
    %156 = vmatprep.subr.mxu0 0.0
    %157 = vmatpush2.msra.mxu0 0.0
    %158 = vmatprep.subr.mxu0 0.0
    %159 = vmatpush2.msra.mxu0 0.0
    %160 = vmatprep.subr.mxu0 0.0
    %161 = vmatpush2.msra.mxu0 0.0
    %162 = vmatprep.subr.mxu0 0.0
    %163 = vmatpush2.msra.mxu0 0.0
    %164 = vmatprep.subr.mxu0 0.0
    %165 = vmatpush2.msra.mxu0 0.0
    %166 = vmatprep.subr.mxu0 0.0
    %167 = vmatpush2.msra.mxu0 0.0
    %168 = vmatprep.subr.mxu0 0.0
    %169 = vmatpush2.msra.mxu0 0.0
    %170 = vmatprep.subr.mxu0 0.0
    %171 = vmatpush2.msra.mxu0 0.0
    %172 = vmatprep.subr.mxu0 0.0
    %173 = vmatpush2.msra.mxu0 0.0
    %174 = vmatprep.subr.mxu0 0.0
    %175 = vmatpush2.msra.mxu0 0.0
    %176 = vmatprep.subr.mxu0 0.0
    %177 = vmatpush2.msra.mxu0 0.0
    %178 = vmatprep.subr.mxu0 0.0
    %179 = vmatpush2.msra.mxu0 0.0
    %180 = vmatprep.subr.mxu0 0.0
    %181 = vmatpush2.msra.mxu0 0.0
    %182 = vmatprep.mubr.f32.mxu0 0.0
    %183 = vmatmul.mubr.f32.gmra.mxu0 %v33
    %v184 = vpop.f32.mrf.mxu0
    %v185 = vadd.f32 %v116, %v184
    %v186 = vpop.f32.mrf.mxu0
    %187 = vdwg.mxu0
    %v188 = vxor.u32 %v185, 2147483648
    %v189 = vmul.f32 %v188, 1.442695
    %v190 = vpow.pop %v189
    %v191 = vadd.f32 %v190, 1.0
    %v192 = vrcp.pop %v191
    %v193 = vmul.f32 1.0, %v192
    %v194 = vmul.f32 %v102, %v193
    %s195 = scalar_lea.vmem %s1, 32
    %v196 = vld [vmem:[%s195] sm:$0xff]
    %v197 = vld [vmem:[%s195 + $0x8] sm:$0xff]
    %v198 = vld [vmem:[%s195 + $0x10] sm:$0xff]
    %v199 = vld [vmem:[%s195 + $0x18] sm:$0xff]
    %s200 = scalar_lea.vmem %s2, 1
    %v201 = vld [vmem:[%s200] sm:$0x1]
    %v203 = vlaneseq
    %v204 = vshrl.u32 %v203, 7
    %v205 = vsub.s32 0, %v204
    %v206 = vrot.slane %v201, %v205
    %208 = vmatprep.subr.mxu0 0.0
    %209 = vmatpush1.msra.mxu0 0.0
    %210 = vmatprep.subr.mxu0 0.0
    %211 = vmatpush1.msra.mxu0 0.0
    %212 = vmatprep.subr.mxu0 0.0
    %213 = vmatpush1.msra.mxu0 0.0
    %214 = vmatprep.subr.mxu0 0.0
    %215 = vmatpush1.msra.mxu0 0.0
    %216 = vmatprep.subr.mxu0 0.0
    %217 = vmatpush1.msra.mxu0 0.0
    %218 = vmatprep.subr.mxu0 0.0
    %219 = vmatpush1.msra.mxu0 0.0
    %220 = vmatprep.subr.mxu0 0.0
    %221 = vmatpush1.msra.mxu0 0.0
    %222 = vmatprep.subr.mxu0 0.0
    %223 = vmatpush1.msra.mxu0 0.0
    %224 = vmatprep.subr.mxu0 0.0
    %225 = vmatpush1.msra.mxu0 0.0
    %226 = vmatprep.subr.mxu0 0.0
    %227 = vmatpush1.msra.mxu0 0.0
    %228 = vmatprep.subr.mxu0 0.0
    %229 = vmatpush1.msra.mxu0 0.0
    %230 = vmatprep.subr.mxu0 0.0
    %231 = vmatpush1.msra.mxu0 0.0
    %232 = vmatprep.subr.mxu0 0.0
    %233 = vmatpush1.msra.mxu0 %v199
    %234 = vmatprep.subr.mxu0 0.0
    %235 = vmatpush1.msra.mxu0 %v198
    %236 = vmatprep.subr.mxu0 0.0
    %237 = vmatpush1.msra.mxu0 %v197
    %238 = vmatprep.subr.mxu0 0.0
    %239 = vmatpush1.msra.mxu0 %v196
    %240 = vmatprep.subr.mxu0 0.0
    %241 = vmatpush2.msra.mxu0 0.0
    %242 = vmatprep.subr.mxu0 0.0
    %243 = vmatpush2.msra.mxu0 0.0
    %244 = vmatprep.subr.mxu0 0.0
    %245 = vmatpush2.msra.mxu0 0.0
    %246 = vmatprep.subr.mxu0 0.0
    %247 = vmatpush2.msra.mxu0 0.0
    %248 = vmatprep.subr.mxu0 0.0
    %249 = vmatpush2.msra.mxu0 0.0
    %250 = vmatprep.subr.mxu0 0.0
    %251 = vmatpush2.msra.mxu0 0.0
    %252 = vmatprep.subr.mxu0 0.0
    %253 = vmatpush2.msra.mxu0 0.0
    %254 = vmatprep.subr.mxu0 0.0
    %255 = vmatpush2.msra.mxu0 0.0
    %256 = vmatprep.subr.mxu0 0.0
    %257 = vmatpush2.msra.mxu0 0.0
    %258 = vmatprep.subr.mxu0 0.0
    %259 = vmatpush2.msra.mxu0 0.0
    %260 = vmatprep.subr.mxu0 0.0
    %261 = vmatpush2.msra.mxu0 0.0
    %262 = vmatprep.subr.mxu0 0.0
    %263 = vmatpush2.msra.mxu0 0.0
    %264 = vmatprep.subr.mxu0 0.0
    %265 = vmatpush2.msra.mxu0 0.0
    %266 = vmatprep.subr.mxu0 0.0
    %267 = vmatpush2.msra.mxu0 0.0
    %268 = vmatprep.subr.mxu0 0.0
    %269 = vmatpush2.msra.mxu0 0.0
    %270 = vmatprep.subr.mxu0 0.0
    %271 = vmatpush2.msra.mxu0 0.0
    %272 = vmatprep.mubr.f32.mxu0 0.0
    %273 = vmatmul.mubr.f32.gmra.mxu0 %v33
    %v274 = vpop.f32.mrf.mxu0
    %v275 = vadd.f32 %v206, %v274
    %v276 = vpop.f32.mrf.mxu0
    %277 = vdwg.mxu0
    %s278 = scalar_lea.vmem %s1, 96
    %v279 = vld [vmem:[%s278] sm:$0xff]
    %v280 = vld [vmem:[%s278 + $0x8] sm:$0xff]
    %v281 = vld [vmem:[%s278 + $0x10] sm:$0xff]
    %v282 = vld [vmem:[%s278 + $0x18] sm:$0xff]
    %s283 = scalar_lea.vmem %s2, 3
    %v284 = vld [vmem:[%s283] sm:$0x1]
    %v286 = vlaneseq
    %v287 = vshrl.u32 %v286, 7
    %v288 = vsub.s32 0, %v287
    %v289 = vrot.slane %v284, %v288
    %291 = vmatprep.subr.mxu0 0.0
    %292 = vmatpush1.msra.mxu0 0.0
    %293 = vmatprep.subr.mxu0 0.0
    %294 = vmatpush1.msra.mxu0 0.0
    %295 = vmatprep.subr.mxu0 0.0
    %296 = vmatpush1.msra.mxu0 0.0
    %297 = vmatprep.subr.mxu0 0.0
    %298 = vmatpush1.msra.mxu0 0.0
    %299 = vmatprep.subr.mxu0 0.0
    %300 = vmatpush1.msra.mxu0 0.0
    %301 = vmatprep.subr.mxu0 0.0
    %302 = vmatpush1.msra.mxu0 0.0
    %303 = vmatprep.subr.mxu0 0.0
    %304 = vmatpush1.msra.mxu0 0.0
    %305 = vmatprep.subr.mxu0 0.0
    %306 = vmatpush1.msra.mxu0 0.0
    %307 = vmatprep.subr.mxu0 0.0
    %308 = vmatpush1.msra.mxu0 0.0
    %309 = vmatprep.subr.mxu0 0.0
    %310 = vmatpush1.msra.mxu0 0.0
    %311 = vmatprep.subr.mxu0 0.0
    %312 = vmatpush1.msra.mxu0 0.0
    %313 = vmatprep.subr.mxu0 0.0
    %314 = vmatpush1.msra.mxu0 0.0
    %315 = vmatprep.subr.mxu0 0.0
    %316 = vmatpush1.msra.mxu0 %v282
    %317 = vmatprep.subr.mxu0 0.0
    %318 = vmatpush1.msra.mxu0 %v281
    %319 = vmatprep.subr.mxu0 0.0
    %320 = vmatpush1.msra.mxu0 %v280
    %321 = vmatprep.subr.mxu0 0.0
    %322 = vmatpush1.msra.mxu0 %v279
    %323 = vmatprep.subr.mxu0 0.0
    %324 = vmatpush2.msra.mxu0 0.0
    %325 = vmatprep.subr.mxu0 0.0
    %326 = vmatpush2.msra.mxu0 0.0
    %327 = vmatprep.subr.mxu0 0.0
    %328 = vmatpush2.msra.mxu0 0.0
    %329 = vmatprep.subr.mxu0 0.0
    %330 = vmatpush2.msra.mxu0 0.0
    %331 = vmatprep.subr.mxu0 0.0
    %332 = vmatpush2.msra.mxu0 0.0
    %333 = vmatprep.subr.mxu0 0.0
    %334 = vmatpush2.msra.mxu0 0.0
    %335 = vmatprep.subr.mxu0 0.0
    %336 = vmatpush2.msra.mxu0 0.0
    %337 = vmatprep.subr.mxu0 0.0
    %338 = vmatpush2.msra.mxu0 0.0
    %339 = vmatprep.subr.mxu0 0.0
    %340 = vmatpush2.msra.mxu0 0.0
    %341 = vmatprep.subr.mxu0 0.0
    %342 = vmatpush2.msra.mxu0 0.0
    %343 = vmatprep.subr.mxu0 0.0
    %344 = vmatpush2.msra.mxu0 0.0
    %345 = vmatprep.subr.mxu0 0.0
    %346 = vmatpush2.msra.mxu0 0.0
    %347 = vmatprep.subr.mxu0 0.0
    %348 = vmatpush2.msra.mxu0 0.0
    %349 = vmatprep.subr.mxu0 0.0
    %350 = vmatpush2.msra.mxu0 0.0
    %351 = vmatprep.subr.mxu0 0.0
    %352 = vmatpush2.msra.mxu0 0.0
    %353 = vmatprep.subr.mxu0 0.0
    %354 = vmatpush2.msra.mxu0 0.0
    %355 = vmatprep.mubr.f32.mxu0 0.0
    %356 = vmatmul.mubr.f32.gmra.mxu0 %v33
    %v357 = vpop.f32.mrf.mxu0
    %v358 = vadd.f32 %v289, %v357
    %v359 = vpop.f32.mrf.mxu0
    %360 = vdwg.mxu0
    %v361 = vxor.u32 %v358, 2147483648
    %v362 = vmul.f32 %v361, 1.442695
    %v363 = vpow.pop %v362
    %v364 = vadd.f32 %v363, 1.0
    %v365 = vrcp.pop %v364
    %v366 = vmul.f32 1.0, %v365
    %v367 = vmul.f32 %v275, %v366
    %v368 = vmul.f32 %v367, 0.5
    %v369 = vmul.f32 %v368, 1.442695
    %v370 = vpow.pop %v369
    %v371 = vmul.f32 %v19, %v370
    %v372 = vadd.f32 %v371, %v194
    %vm373 = vcmask 130048
    %374 = vst.msk [vmem:[#allocation2] sm:$0xff] %vm373, %v372
    %s375 = scalar_lea.vmem [#allocation2], 8
    %376 = vst.msk [vmem:[%s375] sm:$0xff] %vm373, %v194
    %s377 = scalar_lea.vmem [#allocation2], 16
    %378 = vst.msk [vmem:[%s377] sm:$0xff] %vm373, %v367
    // Predicated region
    $region18: #{tpu_custom_call.1} parent=1 // pred_check
      _
    $region19: #{tpu_custom_call.1} parent=1 // pred_check_branch
      %380 = sbr.rel (0) target = $region21
    $region20: #{tpu_custom_call.1} parent=1 // pred_region
      %s382 = ssub.s32 384, 384
      %383 = vsyncadd [#allocation3], %s382
      %s384 = sshll.u32 [#allocation2], 4
      %s385 = int_to_ptr.vmem [resolvable:$true] %s384
      %390 = dma.vmem_to_hbm [thread:$0]  %s385, 384, %s4, [#allocation3], 128, 128, 8
    $region21: #{tpu_custom_call.1} parent=1 // pred_fallthru
      _
    // Predicated region
    $region22: #{tpu_custom_call.1} parent=1 // pred_check
      _
    $region23: #{tpu_custom_call.1} parent=1 // pred_check_branch
      %392 = sbr.rel (0) target = $region25
    $region24: #{tpu_custom_call.1} parent=1 // pred_region
      %393 = dma.done [#allocation3], 384
    $region25: #{tpu_custom_call.1} parent=1 // pred_fallthru
      _
    %394 = vsyncpa [#allocation3], 1

</llo_original>
